<compile_context>
chip_gen: v6e
topology: v6e:2x2x1
jax: 0.10.0
libtpu: 0.0.40
codegen_flags: <defaults>
</compile_context>

<pallas_src>
import functools

import numpy as np
import jax
import jax.numpy as jnp
from jax.experimental import pallas as pl
from jax.experimental.pallas import tpu as pltpu


# ---------------------------------------------------------------------------
# Pallas kernel: fused space-to-depth (via BlockSpec) + 1x1 conv + BN + SiLU
# ---------------------------------------------------------------------------
def _focus_kernel(x_ref, we_ref, wo_ref, s_ref, b_ref, out_ref, *,
                  mxu_dtype, fold_out):
    th, _, wo_pix, cin2 = x_ref.shape          # (tile rows, 2 h-parities, W/2, 2*C1)
    c2 = we_ref.shape[-1]
    rows = th * wo_pix

    # Single contiguous block holds both h-parities; lanes inside cin2 are
    # [w-even channels | w-odd channels].
    x = x_ref[...]
    xe = x[:, 0].reshape(rows, cin2).astype(mxu_dtype)   # h-even plane
    xo = x[:, 1].reshape(rows, cin2).astype(mxu_dtype)   # h-odd plane

    # 1x1 conv over the 4*C1 gathered channels == two channel matmuls, f32 acc.
    acc = jnp.dot(xe, we_ref[...], preferred_element_type=jnp.float32)
    acc = acc + jnp.dot(xo, wo_ref[...], preferred_element_type=jnp.float32)

    # folded BatchNorm affine (f32, VPU).
    y = acc * s_ref[...] + b_ref[...]
    # SiLU: y * sigmoid(y) = y / (1 + exp(-y)); exp + approx reciprocal -> EUP.
    y = y * pl.reciprocal(1.0 + jnp.exp(-y), approx=True)

    if fold_out:
        # lane-dense store: last dim = (W/2)*C2, a multiple of 128.
        out_ref[...] = y.reshape(th, wo_pix * c2).astype(out_ref.dtype)
    else:
        out_ref[...] = y.reshape(th, wo_pix, c2).astype(out_ref.dtype)


# ---------------------------------------------------------------------------
# VMEM-budget-driven, generation-aware tile selection
# ---------------------------------------------------------------------------
def _round_up(x, m):
    return -(-x // m) * m


def _vmem_tile_bytes(shape, dtype):
    """Approx VMEM bytes of a (..., S, L) block incl. sublane/lane padding."""
    itemsize = jnp.dtype(dtype).itemsize
    sub_mult = 8 * max(1, 4 // itemsize)       # f32: 8, bf16: 16, int8: 32 sublanes
    shape = tuple(int(d) for d in shape)
    if len(shape) == 1:
        shape = (1,) + shape
    *lead, sub, lane = shape
    sub = _round_up(max(sub, 1), sub_mult)
    lane = _round_up(max(lane, 1), 128)
    n = 1
    for d in lead:
        n *= max(d, 1)
    return n * sub * lane * itemsize


def _tpu_budget_and_cores():
    """Per-step working-set budget (bytes), TensorCore count, physical VMEM."""
    vmem_cap = 0
    cores = 1
    try:
        info = pltpu.get_tpu_info()
        vmem_cap = int(getattr(info, "vmem_capacity_bytes", 0) or 0)
        for attr in ("num_cores", "tensorcores_per_chip", "num_tensorcores"):
            v = getattr(info, attr, None)
            if v:
                cores = int(v)
                break
    except Exception:
        pass
    if vmem_cap <= 0:
        vmem_cap = 64 << 20                    # conservative fallback (v7x per-TC)
    if cores <= 0:
        cores = 1
    # ~45% of physical VMEM for the double-buffered working set:
    #   v7x (64 MiB) -> ~29 MiB ; v5e/v6e (128 MiB) -> ~57 MiB
    budget = min(max(vmem_cap * 45 // 100, 16 << 20), 96 << 20)
    return budget, cores, vmem_cap


def _pick_th(ho, th_max):
    """Largest exact divisor of ho <= th_max, preferring multiples of 8."""
    th_max = int(max(1, min(ho, th_max)))
    best = None
    for th in range(th_max, 0, -1):
        if ho % th == 0:
            if th % 8 == 0 or th == ho:
                return th
            if best is None:
                best = th
    return best if best is not None else 1


def _choose_tile_rows(n_batch, ho, wo, cin2, c2, x_dtype, out_dtype, w_dtype):
    budget, cores, vmem_cap = _tpu_budget_and_cores()
    # TODO(synk): per_row is dominated by 128-lane padding when cin2 is tiny
    # (YOLO stem C1=3); a lane-dense input layout would shrink this ~20x.
    in_row = 2 * _vmem_tile_bytes((wo, cin2), x_dtype)     # both h-parities
    out_row = _vmem_tile_bytes((wo, c2), out_dtype)
    per_row = in_row + out_row
    fixed = 2 * (2 * _vmem_tile_bytes((cin2, c2), w_dtype)
                 + 2 * _vmem_tile_bytes((1, c2), jnp.float32))
    avail = max(budget - fixed, per_row)
    th_max = max(1, avail // (2 * per_row))                # x2: double buffering
    th = _pick_th(ho, th_max)
    # Only split for parallelism when there is >1 TensorCore to feed (v7x);
    # on v5e/v6e the grid is a serial loop and extra steps are pure overhead.
    if cores > 1 and n_batch * (ho // th) < cores:
        blocks_needed = -(-cores // max(1, n_batch))
        th = _pick_th(ho, max(1, ho // blocks_needed))
    needed = 2 * th * per_row + fixed
    vmem_limit = int(min(vmem_cap, max(needed + (8 << 20), 32 << 20)))
    return int(th), vmem_limit


# ---------------------------------------------------------------------------
# One-time parameter preparation (weight split, BN fold reshape, casts)
# ---------------------------------------------------------------------------
def prepare_params(params, c1, *, mxu_dtype=jnp.bfloat16):
    """Do the weight split / casts once at init, not per forward call."""
    w4 = jnp.asarray(params["w"])              # (4*C1, C2), PyTorch concat order
    c2 = int(w4.shape[1])
    # rows of w4: [h-even w-even | h-odd w-even | h-even w-odd | h-odd w-odd]
    w_even = jnp.concatenate([w4[0:c1], w4[2 * c1:3 * c1]], axis=0).astype(mxu_dtype)
    w_odd = jnp.concatenate([w4[c1:2 * c1], w4[3 * c1:4 * c1]], axis=0).astype(mxu_dtype)
    scale = jnp.asarray(params["bn_scale"]).reshape(1, c2).astype(jnp.float32)
    bias = jnp.asarray(params["bn_bias"]).reshape(1, c2).astype(jnp.float32)
    return {"w_even": w_even, "w_odd": w_odd, "scale": scale, "bias": bias,
            "c1": int(c1), "c2": c2, "mxu_dtype": mxu_dtype}


# ---------------------------------------------------------------------------
# Forward pass (NHWC is the preferred, transpose-free entry point)
# ---------------------------------------------------------------------------
def focus_forward_nhwc(x_nhwc, prepared):
    n, h, w, c1 = x_nhwc.shape
    assert h % 2 == 0 and w % 2 == 0, "Focus requires even spatial dims"
    assert c1 == prepared["c1"]
    ho, wo = h // 2, w // 2
    cin2 = 2 * c1
    c2 = prepared["c2"]
    mxu_dtype = prepared["mxu_dtype"]
    out_dtype = x_nhwc.dtype                   # bf16 in -> bf16 out (half the HBM)

    # Free reshape (no data movement): (N,H,W,C) -> (N, H/2, h-parity, W/2, 2*C);
    # lanes of the last dim are [w-even channels | w-odd channels].
    x_r = x_nhwc.reshape(n, ho, 2, wo, cin2)

    th, vmem_limit = _choose_tile_rows(n, ho, wo, cin2, c2,
                                       x_nhwc.dtype, out_dtype, mxu_dtype)
    n_blk = ho // th                           # th divides ho -> no ragged tail
    fold_out = (wo * c2) % 128 == 0 and (th % 8 == 0 or th == ho)

    kernel = functools.partial(_focus_kernel, mxu_dtype=mxu_dtype,
                               fold_out=fold_out)

    in_specs = [
        # single merged block for both h-parities: one contiguous DMA per step
        pl.BlockSpec((None, th, 2, wo, cin2), lambda bn, bi: (bn, bi, 0, 0, 0)),
        pl.BlockSpec((cin2, c2), lambda bn, bi: (0, 0)),    # W half (h-even)
        pl.BlockSpec((cin2, c2), lambda bn, bi: (0, 0)),    # W half (h-odd)
        pl.BlockSpec((1, c2), lambda bn, bi: (0, 0)),       # BN scale
        pl.BlockSpec((1, c2), lambda bn, bi: (0, 0)),       # BN bias
    ]
    if fold_out:
        out_shape = jax.ShapeDtypeStruct((n, ho, wo * c2), out_dtype)
        out_spec = pl.BlockSpec((None, th, wo * c2), lambda bn, bi: (bn, bi, 0))
    else:
        out_shape = jax.ShapeDtypeStruct((n, ho, wo, c2), out_dtype)
        out_spec = pl.BlockSpec((None, th, wo, c2), lambda bn, bi: (bn, bi, 0, 0))

    out = pl.pallas_call(
        kernel,
        out_shape=out_shape,
        grid=(n, n_blk),
        in_specs=in_specs,
        out_specs=out_spec,
        compiler_params=pltpu.CompilerParams(
            dimension_semantics=("parallel", "parallel"),
            vmem_limit_bytes=vmem_limit),
    )(x_r, prepared["w_even"], prepared["w_odd"],
      prepared["scale"], prepared["bias"])

    if fold_out:
        out = out.reshape(n, ho, wo, c2)       # free: (wo, c2) is contiguous
    return out


def focus_forward(x_nchw, prepared):
    """PyTorch-compatible NCHW boundary (matches the nn.Module contract)."""
    # TODO(synk): these boundary transposes are each a full HBM round trip; an
    # NHWC pipeline should call focus_forward_nhwc directly (preferred entry).
    x = jnp.transpose(x_nchw, (0, 2, 3, 1))
    y = focus_forward_nhwc(x, prepared)
    return jnp.transpose(y, (0, 3, 1, 2))


# ---------------------------------------------------------------------------
# Deterministic parameter init (BN folded to scale/bias, eps = 1e-5)
# ---------------------------------------------------------------------------
def init_params(key, c1, c2, eps=1e-5):
    kw, kg, kb, km, kv = jax.random.split(key, 5)
    fan = 4 * c1
    # weight rows follow the PyTorch concat order:
    # [h-even w-even | h-odd w-even | h-even w-odd | h-odd w-odd], each C1 wide.
    w4 = jax.random.normal(kw, (4 * c1, c2), jnp.float32) / np.sqrt(fan)
    gamma = 1.0 + 0.1 * jax.random.normal(kg, (c2,), jnp.float32)
    beta = 0.1 * jax.random.normal(kb, (c2,), jnp.float32)
    mean = 0.1 * jax.random.normal(km, (c2,), jnp.float32)
    var = jnp.abs(1.0 + 0.1 * jax.random.normal(kv, (c2,), jnp.float32))
    scale = gamma / jnp.sqrt(var + eps)
    bias = beta - mean * scale
    return {"w": w4, "bn_scale": scale, "bn_bias": bias}


# ---------------------------------------------------------------------------
# Pure-JAX reference mirroring the PyTorch module (NCHW)
# ---------------------------------------------------------------------------
def ref_forward(x_nchw, params):
    x = x_nchw
    cat = jnp.concatenate(
        [x[:, :, ::2, ::2], x[:, :, 1::2, ::2],
         x[:, :, ::2, 1::2], x[:, :, 1::2, 1::2]], axis=1)   # (N, 4*C1, H/2, W/2)
    y = jnp.einsum("nchw,cd->ndhw", cat, params["w"],
                   precision=jax.lax.Precision.HIGHEST)
    y = (y * params["bn_scale"][None, :, None, None]
         + params["bn_bias"][None, :, None, None])
    return y * jax.nn.sigmoid(y)


if __name__ == "__main__":
    root = jax.random.PRNGKey(0)
    k1, k2, k3, k4 = jax.random.split(root, 4)

    # Small shapes consistent with the module: x NCHW = (2, 4, 16, 16), Focus(4, 8)
    x_small = jax.random.normal(k1, (2, 4, 16, 16), jnp.float32)
    p_small = init_params(k2, 4, 8)
    ref = jax.block_until_ready(ref_forward(x_small, p_small))

    # f32-MXU path through the PyTorch-compatible NCHW wrapper.
    prep_f32 = prepare_params(p_small, 4, mxu_dtype=jnp.float32)
    out = jax.block_until_ready(focus_forward(x_small, prep_f32))
    assert out.shape == (2, 8, 8, 8), out.shape
    np.testing.assert_allclose(np.asarray(out), np.asarray(ref),
                               rtol=2e-2, atol=2e-2)

    # Preferred path: NHWC end-to-end (no boundary transposes), bf16 activations,
    # bf16 MXU operands, f32 accumulation / BN / SiLU; looser tolerance.
    prep_bf16 = prepare_params(p_small, 4, mxu_dtype=jnp.bfloat16)
    x_small_nhwc_bf16 = jnp.transpose(x_small, (0, 2, 3, 1)).astype(jnp.bfloat16)
    out_nhwc = jax.block_until_ready(focus_forward_nhwc(x_small_nhwc_bf16, prep_bf16))
    assert out_nhwc.shape == (2, 8, 8, 8), out_nhwc.shape
    assert out_nhwc.dtype == jnp.bfloat16
    ref_nhwc = jnp.transpose(ref, (0, 2, 3, 1))
    np.testing.assert_allclose(np.asarray(out_nhwc.astype(jnp.float32)),
                               np.asarray(ref_nhwc), rtol=1e-1, atol=1e-1)

    # Lane-dense (folded-output) path at realistic channel counts (C1=32, C2=128).
    x_big = jax.random.normal(k3, (1, 32, 32, 32), jnp.float32)
    p_big = init_params(k4, 32, 128)
    prep_big = prepare_params(p_big, 32, mxu_dtype=jnp.float32)
    out_big = jax.block_until_ready(focus_forward(x_big, prep_big))
    ref_big = jax.block_until_ready(ref_forward(x_big, p_big))
    assert out_big.shape == (1, 128, 16, 16), out_big.shape
    np.testing.assert_allclose(np.asarray(out_big), np.asarray(ref_big),
                               rtol=2e-2, atol=2e-2)

    print("KERNEL_OK")
</pallas_src>

<mosaic_0001>
module attributes {stable_mosaic.version = 11 : i64} {
  func.func @_focus_kernel(%arg0: i32, %arg1: i32, %arg2: memref<1x8x2x8x8xf32, #tpu.memory_space<vmem>>, %arg3: memref<8x8xf32, #tpu.memory_space<vmem>>, %arg4: memref<8x8xf32, #tpu.memory_space<vmem>>, %arg5: memref<1x8xf32, #tpu.memory_space<vmem>>, %arg6: memref<1x8xf32, #tpu.memory_space<vmem>>, %arg7: memref<1x8x8x8xf32, #tpu.memory_space<vmem>>) attributes {dimension_semantics = [#tpu.dimension_semantics<parallel>, #tpu.dimension_semantics<parallel>], iteration_bounds = array<i64: 2, 1>, scalar_prefetch = 0 : i64, scratch_operands = 0 : i64, tpu.core_type = #tpu.core_type<tc>, window_params = [{transform_indices = @transform_0, window_bounds = array<i64: 1, 8, 2, 8, 8>}, {pipeline_mode = #tpu.pipeline_mode<synchronous>, transform_indices = @transform_1, window_bounds = array<i64: 8, 8>}, {pipeline_mode = #tpu.pipeline_mode<synchronous>, transform_indices = @transform_2, window_bounds = array<i64: 8, 8>}, {pipeline_mode = #tpu.pipeline_mode<synchronous>, transform_indices = @transform_3, window_bounds = array<i64: 1, 8>}, {pipeline_mode = #tpu.pipeline_mode<synchronous>, transform_indices = @transform_4, window_bounds = array<i64: 1, 8>}, {transform_indices = @transform_5, window_bounds = array<i64: 1, 8, 8, 8>}]} {
    %c0 = arith.constant 0 : index
    %c0_0 = arith.constant 0 : index
    %c0_1 = arith.constant 0 : index
    %c0_2 = arith.constant 0 : index
    %c0_3 = arith.constant 0 : index
    %0 = vector.load %arg2[%c0, %c0_0, %c0_1, %c0_2, %c0_3] : memref<1x8x2x8x8xf32, #tpu.memory_space<vmem>>, vector<1x8x2x8x8xf32>
    %1 = vector.shape_cast %0 : vector<1x8x2x8x8xf32> to vector<8x2x8x8xf32>
    %2 = vector.extract_strided_slice %1 {offsets = [0, 0, 0, 0], sizes = [8, 1, 8, 8], strides = [1, 1, 1, 1]} : vector<8x2x8x8xf32> to vector<8x1x8x8xf32>
    %3 = vector.shape_cast %2 : vector<8x1x8x8xf32> to vector<8x8x8xf32>
    %4 = vector.shape_cast %3 : vector<8x8x8xf32> to vector<64x8xf32>
    %5 = vector.extract_strided_slice %1 {offsets = [0, 1, 0, 0], sizes = [8, 1, 8, 8], strides = [1, 1, 1, 1]} : vector<8x2x8x8xf32> to vector<8x1x8x8xf32>
    %6 = vector.shape_cast %5 : vector<8x1x8x8xf32> to vector<8x8x8xf32>
    %7 = vector.shape_cast %6 : vector<8x8x8xf32> to vector<64x8xf32>
    %c0_4 = arith.constant 0 : index
    %c0_5 = arith.constant 0 : index
    %8 = vector.load %arg3[%c0_4, %c0_5] : memref<8x8xf32, #tpu.memory_space<vmem>>, vector<8x8xf32>
    %cst = arith.constant dense<0.000000e+00> : vector<64x8xf32>
    %9 = tpu.matmul %4, %8, %cst {dimension_numbers = #tpu.dot_dimension_numbers<[1], [0], [0], [1], [0, 0, 1, 1], [], []>} : vector<64x8xf32>, vector<8x8xf32>, vector<64x8xf32> -> vector<64x8xf32>
    %c0_6 = arith.constant 0 : index
    %c0_7 = arith.constant 0 : index
    %10 = vector.load %arg4[%c0_6, %c0_7] : memref<8x8xf32, #tpu.memory_space<vmem>>, vector<8x8xf32>
    %cst_8 = arith.constant dense<0.000000e+00> : vector<64x8xf32>
    %11 = tpu.matmul %7, %10, %cst_8 {dimension_numbers = #tpu.dot_dimension_numbers<[1], [0], [0], [1], [0, 0, 1, 1], [], []>} : vector<64x8xf32>, vector<8x8xf32>, vector<64x8xf32> -> vector<64x8xf32>
    %12 = arith.addf %9, %11 : vector<64x8xf32>
    %c0_9 = arith.constant 0 : index
    %c0_10 = arith.constant 0 : index
    %13 = vector.load %arg5[%c0_9, %c0_10] : memref<1x8xf32, #tpu.memory_space<vmem>>, vector<1x8xf32>
    %14 = vector.broadcast %13 : vector<1x8xf32> to vector<64x8xf32>
    %15 = arith.mulf %12, %14 : vector<64x8xf32>
    %c0_11 = arith.constant 0 : index
    %c0_12 = arith.constant 0 : index
    %16 = vector.load %arg6[%c0_11, %c0_12] : memref<1x8xf32, #tpu.memory_space<vmem>>, vector<1x8xf32>
    %17 = vector.broadcast %16 : vector<1x8xf32> to vector<64x8xf32>
    %18 = arith.addf %15, %17 : vector<64x8xf32>
    %cst_13 = arith.constant 0.000000e+00 : f32
    %19 = vector.broadcast %cst_13 : f32 to vector<64x8xf32>
    %20 = arith.subf %19, %18 : vector<64x8xf32>
    %21 = math.exp %20 : vector<64x8xf32>
    %cst_14 = arith.constant 1.000000e+00 : f32
    %22 = vector.broadcast %cst_14 : f32 to vector<64x8xf32>
    %23 = arith.addf %22, %21 : vector<64x8xf32>
    %24 = tpu.reciprocal %23 {approx = true} : vector<64x8xf32> -> vector<64x8xf32>
    %25 = arith.mulf %18, %24 : vector<64x8xf32>
    %26 = vector.shape_cast %25 : vector<64x8xf32> to vector<8x8x8xf32>
    %c0_15 = arith.constant 0 : index
    %c0_16 = arith.constant 0 : index
    %c0_17 = arith.constant 0 : index
    %c0_18 = arith.constant 0 : index
    %27 = vector.load %arg7[%c0_15, %c0_16, %c0_17, %c0_18] : memref<1x8x8x8xf32, #tpu.memory_space<vmem>>, vector<1x8x8x8xf32>
    %28 = vector.shape_cast %27 : vector<1x8x8x8xf32> to vector<8x8x8xf32>
    %29 = vector.shape_cast %26 : vector<8x8x8xf32> to vector<1x8x8x8xf32>
    tpu.vector_store %arg7[%c0_15, %c0_16, %c0_17, %c0_18], %29 {strides = array<i32>} : memref<1x8x8x8xf32, #tpu.memory_space<vmem>>, vector<1x8x8x8xf32>,
    return
  }
  func.func @transform_0(%arg0: i32, %arg1: i32) -> (i32, i32, i32, i32, i32) {
    %c0_i32 = arith.constant 0 : i32
    %c0_i32_0 = arith.constant 0 : i32
    %c0_i32_1 = arith.constant 0 : i32
    %c0_i32_2 = arith.constant 0 : i32
    return %arg0, %arg1, %c0_i32, %c0_i32_0, %c0_i32_1 : i32, i32, i32, i32, i32
  }
  func.func @transform_1(%arg0: i32, %arg1: i32) -> (i32, i32) {
    %c0_i32 = arith.constant 0 : i32
    %c0_i32_0 = arith.constant 0 : i32
    %c0_i32_1 = arith.constant 0 : i32
    return %c0_i32, %c0_i32_0 : i32, i32
  }
  func.func @transform_2(%arg0: i32, %arg1: i32) -> (i32, i32) {
    %c0_i32 = arith.constant 0 : i32
    %c0_i32_0 = arith.constant 0 : i32
    %c0_i32_1 = arith.constant 0 : i32
    return %c0_i32, %c0_i32_0 : i32, i32
  }
  func.func @transform_3(%arg0: i32, %arg1: i32) -> (i32, i32) {
    %c0_i32 = arith.constant 0 : i32
    %c0_i32_0 = arith.constant 0 : i32
    %c0_i32_1 = arith.constant 0 : i32
    return %c0_i32, %c0_i32_0 : i32, i32
  }
  func.func @transform_4(%arg0: i32, %arg1: i32) -> (i32, i32) {
    %c0_i32 = arith.constant 0 : i32
    %c0_i32_0 = arith.constant 0 : i32
    %c0_i32_1 = arith.constant 0 : i32
    return %c0_i32, %c0_i32_0 : i32, i32
  }
  func.func @transform_5(%arg0: i32, %arg1: i32) -> (i32, i32, i32, i32) {
    %c0_i32 = arith.constant 0 : i32
    %c0_i32_0 = arith.constant 0 : i32
    %c0_i32_1 = arith.constant 0 : i32
    return %arg0, %arg1, %c0_i32, %c0_i32_0 : i32, i32, i32, i32
  }
}

</mosaic_0001>

<llo_original>
// kernel: tpu_custom_call.1
$region0: #{tpu_custom_call.1}
  #allocation0 [shape = 'u32[]', space=smem, size = 0x4, offset = 0x4, fixed_abs, tag = 'smem constant byte address 0x4 - core index']
  #allocation1 [shape = 'u32[144,128]{1,0:T(1,128)}', space=vmem, size = 0x12000, scoped, tag = 'internal scratch']
  %s0 = inlined_call_operand.hbm [shape: f32[2,8,2,8,8], index: 0, kind: input, shape index: {}]
  %s1 = inlined_call_operand.hbm [shape: f32[8,8], index: 1, kind: input, shape index: {}]
  %s2 = inlined_call_operand.hbm [shape: f32[8,8], index: 2, kind: input, shape index: {}]
  %s3 = inlined_call_operand.vmem [shape: f32[1,8], index: 3, kind: input, shape index: {}]
  %s4 = inlined_call_operand.vmem [shape: f32[1,8], index: 4, kind: input, shape index: {}]
  %s5 = inlined_call_operand.hbm [shape: f32[2,8,8,8], index: 5, kind: output, shape index: {}]
  %s6 = sld [smem:[#allocation0]]
  $region65: #{tpu_custom_call.1} parent=0
    _
  %s8 = ssub.s32 1, %s6
  %s9 = scalar_select 0, %s8, %s6
  $region1: #{tpu_custom_call.1} parent=0
    #allocation2 [shape = 'u8[131072]{0}', space=vmem, size = 0x20000, scoped, tag = 'input window, operand 0']
    #allocation3 [shape = 's32[2]{0}', space=sflag, size = 0x8, scoped, tag = 'scoped memory for tpu_custom_call.1']
    #allocation4 [shape = 's32[2]{0}', space=sflag, size = 0x8, scoped, tag = 'scoped memory for tpu_custom_call.1']
    #allocation5 [shape = 'u8[4096]{0}', space=vmem, size = 0x1000, scoped, tag = 'input window, operand 1, single buffered']
    #allocation6 [shape = 's32[1]{0}', space=sflag, size = 0x4, scoped, tag = 'scoped memory for tpu_custom_call.1']
    #allocation7 [shape = 'u8[4096]{0}', space=vmem, size = 0x1000, scoped, tag = 'input window, operand 2, single buffered']
    #allocation8 [shape = 'u8[65536]{0}', space=vmem, size = 0x10000, scoped, tag = 'output window, operand 0']
    %10 = vsyncpa [#allocation3], 0
    %s11 = scalar_lea.sflag [#allocation3], 1
    %12 = vsyncpa %s11, 0
    %13 = vsyncpa [#allocation6], 0
    %14 = vsyncpa [#allocation4], 0
    %s15 = scalar_lea.sflag [#allocation4], 1
    %16 = vsyncpa %s15, 0
    loop: start=0, step=1, limit=4
    $region2: #{tpu_custom_call.1} parent=1 // loop_pre_header
      _
    $region3: #{tpu_custom_call.1} parent=1 // loop_header
      %s18 = sphi 0, %s22
      %p19 = scmp.ge.s32.totalorder %s18, 4
      %s25 = sphi 0, %s37
      %s26 = sphi 0, %s33
      %s27 = sphi 0, %s25
      %s28 = sphi 0, %s26
      %s29 = sphi 0, %s27
      %s30 = sphi 0, %s28
      %s42 = sphi 0, %s44
      %s45 = sphi 0, %s42
      %s46 = sphi 0, %s45
      %s62 = sphi 0, %s46
      %s66 = sphi 0, %s66
      %s68 = sphi 0, %s66
      %s69 = sphi 0, %s68
      %s83 = sphi 0, %s69
      %s87 = sphi 0, %s87
      %s89 = sphi 0, %s87
      %s90 = sphi 0, %s89
      %s104 = sphi 0, %s90
      %s108 = sphi 0, %s108
      %s110 = sphi 0, %s108
      %s111 = sphi 0, %s110
      %s125 = sphi 0, %s111
      %s129 = sphi 0, %s129
      %s131 = sphi 0, %s129
      %s132 = sphi 0, %s131
      %s146 = sphi 0, %s132
      %s154 = sphi 0, %s156
      %s157 = sphi 0, %s154
      %s158 = sphi 0, %s157
      %s174 = sphi 0, %s158
    $region4: #{tpu_custom_call.1} parent=1 // loop_header_branch
      %21 = sbr.rel (%p19) target = $region8
    $region5: #{tpu_custom_call.1} parent=1 // loop_body
      %s23 = ssub.s32 %s18, 1
      %s24 = ssub.s32 %s18, 2
      %s31 = sadd.s32 1, %s26
      %p32 = scmp.ge.s32.totalorder %s31, 1
      %s33 = scalar_select %p32, 0, %s31
      %s34 = sadd.s32 1, %s25
      %s35 = scalar_select %p32, %s34, %s25
      %p36 = scmp.ge.s32.totalorder %s35, 2
      %s37 = scalar_select %p36, 0, %s35
      %s38 = ssub.s32 %s25, %s37
      %s39 = ssub.s32 %s26, %s33
      %s40 = sor.u32 %s38, %s39
      %p41 = scmp.eq.s32.totalorder %s40, 0
      %s43 = sadd.s32 %s42, 1
      %s44 = scalar_select %p41, %s42, %s43
      %p47 = pneg %p41
      %p48 = scmp.eq.s32.totalorder %s18, 1
      %p49 = por %p47, %p48
      %p50 = scmp.ne.s32.totalorder %s42, %s45
      %p51 = scmp.eq.s32.totalorder %s18, 0
      %p52 = por %p50, %p51
      %p53 = scmp.ne.s32.totalorder %s42, %s45
      %p54 = scmp.eq.s32.totalorder %s23, 1
      %p55 = por %p53, %p54
      %p56 = scmp.ne.s32.totalorder %s45, %s46
      %p57 = scmp.eq.s32.totalorder %s23, 0
      %p58 = por %p56, %p57
      %p59 = scmp.ne.s32.totalorder %s45, %s46
      %p60 = scmp.eq.s32.totalorder %s24, 1
      %p61 = por %p59, %p60
      %p63 = scmp.ne.s32.totalorder %s46, %s62
      %p64 = scmp.eq.s32.totalorder %s24, 0
      %p65 = por %p63, %p64
      %s67 = sadd.s32 %s66, 1
      %p70 = scmp.eq.s32.totalorder %s18, 1
      %p71 = scmp.ne.s32.totalorder %s66, %s68
      %p72 = scmp.eq.s32.totalorder %s18, 0
      %p73 = por %p71, %p72
      %p74 = scmp.ne.s32.totalorder %s66, %s68
      %p75 = scmp.eq.s32.totalorder %s23, 1
      %p76 = por %p74, %p75
      %p77 = scmp.ne.s32.totalorder %s68, %s69
      %p78 = scmp.eq.s32.totalorder %s23, 0
      %p79 = por %p77, %p78
      %p80 = scmp.ne.s32.totalorder %s68, %s69
      %p81 = scmp.eq.s32.totalorder %s24, 1
      %p82 = por %p80, %p81
      %p84 = scmp.ne.s32.totalorder %s69, %s83
      %p85 = scmp.eq.s32.totalorder %s24, 0
      %p86 = por %p84, %p85
      %s88 = sadd.s32 %s87, 1
      %p91 = scmp.eq.s32.totalorder %s18, 1
      %p92 = scmp.ne.s32.totalorder %s87, %s89
      %p93 = scmp.eq.s32.totalorder %s18, 0
      %p94 = por %p92, %p93
      %p95 = scmp.ne.s32.totalorder %s87, %s89
      %p96 = scmp.eq.s32.totalorder %s23, 1
      %p97 = por %p95, %p96
      %p98 = scmp.ne.s32.totalorder %s89, %s90
      %p99 = scmp.eq.s32.totalorder %s23, 0
      %p100 = por %p98, %p99
      %p101 = scmp.ne.s32.totalorder %s89, %s90
      %p102 = scmp.eq.s32.totalorder %s24, 1
      %p103 = por %p101, %p102
      %p105 = scmp.ne.s32.totalorder %s90, %s104
      %p106 = scmp.eq.s32.totalorder %s24, 0
      %p107 = por %p105, %p106
      %s109 = sadd.s32 %s108, 1
      %p112 = scmp.eq.s32.totalorder %s18, 1
      %p113 = scmp.ne.s32.totalorder %s108, %s110
      %p114 = scmp.eq.s32.totalorder %s18, 0
      %p115 = por %p113, %p114
      %p116 = scmp.ne.s32.totalorder %s108, %s110
      %p117 = scmp.eq.s32.totalorder %s23, 1
      %p118 = por %p116, %p117
      %p119 = scmp.ne.s32.totalorder %s110, %s111
      %p120 = scmp.eq.s32.totalorder %s23, 0
      %p121 = por %p119, %p120
      %p122 = scmp.ne.s32.totalorder %s110, %s111
      %p123 = scmp.eq.s32.totalorder %s24, 1
      %p124 = por %p122, %p123
      %p126 = scmp.ne.s32.totalorder %s111, %s125
      %p127 = scmp.eq.s32.totalorder %s24, 0
      %p128 = por %p126, %p127
      %s130 = sadd.s32 %s129, 1
      %p133 = scmp.eq.s32.totalorder %s18, 1
      %p134 = scmp.ne.s32.totalorder %s129, %s131
      %p135 = scmp.eq.s32.totalorder %s18, 0
      %p136 = por %p134, %p135
      %p137 = scmp.ne.s32.totalorder %s129, %s131
      %p138 = scmp.eq.s32.totalorder %s23, 1
      %p139 = por %p137, %p138
      %p140 = scmp.ne.s32.totalorder %s131, %s132
      %p141 = scmp.eq.s32.totalorder %s23, 0
      %p142 = por %p140, %p141
      %p143 = scmp.ne.s32.totalorder %s131, %s132
      %p144 = scmp.eq.s32.totalorder %s24, 1
      %p145 = por %p143, %p144
      %p147 = scmp.ne.s32.totalorder %s132, %s146
      %p148 = scmp.eq.s32.totalorder %s24, 0
      %p149 = por %p147, %p148
      %s150 = ssub.s32 %s25, %s37
      %s151 = ssub.s32 %s26, %s33
      %s152 = sor.u32 %s150, %s151
      %p153 = scmp.eq.s32.totalorder %s152, 0
      %s155 = sadd.s32 %s154, 1
      %s156 = scalar_select %p153, %s154, %s155
      %p159 = pneg %p153
      %p160 = scmp.eq.s32.totalorder %s18, 1
      %p161 = por %p159, %p160
      %p162 = scmp.ne.s32.totalorder %s154, %s157
      %p163 = scmp.eq.s32.totalorder %s18, 0
      %p164 = por %p162, %p163
      %p165 = scmp.ne.s32.totalorder %s154, %s157
      %p166 = scmp.eq.s32.totalorder %s23, 1
      %p167 = por %p165, %p166
      %p168 = scmp.ne.s32.totalorder %s157, %s158
      %p169 = scmp.eq.s32.totalorder %s23, 0
      %p170 = por %p168, %p169
      %p171 = scmp.ne.s32.totalorder %s157, %s158
      %p172 = scmp.eq.s32.totalorder %s24, 1
      %p173 = por %p171, %p172
      %p175 = scmp.ne.s32.totalorder %s158, %s174
      %p176 = scmp.eq.s32.totalorder %s24, 0
      %p177 = por %p175, %p176
      %p178 = scmp.le.s32.totalorder 1, %s18
      %p179 = scmp.lt.s32.totalorder %s18, 3
      %p180 = pnand %p178, %p179
      %p181 = pneg %p180
      // Predicated region
      $region9: #{tpu_custom_call.1} parent=5 // pred_check
        _
      $region10: #{tpu_custom_call.1} parent=5 // pred_check_branch
        %183 = sbr.rel (%p180) target = $region12
      $region11: #{tpu_custom_call.1} parent=5 // pred_region
        %s184 = ssub.s32 %s18, 1
        // Predicated region
        $region13: #{tpu_custom_call.1} parent=11 // pred_check
          %p185 = pneg %p79
        $region14: #{tpu_custom_call.1} parent=11 // pred_check_branch
          %187 = sbr.rel (%p185) target = $region16
        $region15: #{tpu_custom_call.1} parent=11 // pred_region
          %s189 = ssub.s32 128, 128
          %190 = vsyncadd [#allocation6], %s189
          %s192 = sshll.u32 [#allocation5], 4
          %s193 = int_to_ptr.vmem [resolvable:$true] %s192
          %195 = dma.hbm_to_vmem [thread:$0]  %s1, 128, %s193, [#allocation6]
        $region16: #{tpu_custom_call.1} parent=11 // pred_fallthru
          _
        // Predicated region
        $region17: #{tpu_custom_call.1} parent=11 // pred_check
          %p196 = pneg %p100
        $region18: #{tpu_custom_call.1} parent=11 // pred_check_branch
          %198 = sbr.rel (%p196) target = $region20
        $region19: #{tpu_custom_call.1} parent=11 // pred_region
          %s200 = ssub.s32 128, 128
          %201 = vsyncadd [#allocation6], %s200
          %s203 = sshll.u32 [#allocation7], 4
          %s204 = int_to_ptr.vmem [resolvable:$true] %s203
          %206 = dma.hbm_to_vmem [thread:$0]  %s2, 128, %s204, [#allocation6]
        $region20: #{tpu_custom_call.1} parent=11 // pred_fallthru
          _
        // Predicated region
        $region21: #{tpu_custom_call.1} parent=11 // pred_check
          %p207 = pneg %p121
        $region22: #{tpu_custom_call.1} parent=11 // pred_check_branch
          %209 = sbr.rel (%p207) target = $region24
        $region23: #{tpu_custom_call.1} parent=11 // pred_region
          _
        $region24: #{tpu_custom_call.1} parent=11 // pred_fallthru
          _
        // Predicated region
        $region25: #{tpu_custom_call.1} parent=11 // pred_check
          %p210 = pneg %p142
        $region26: #{tpu_custom_call.1} parent=11 // pred_check_branch
          %212 = sbr.rel (%p210) target = $region28
        $region27: #{tpu_custom_call.1} parent=11 // pred_region
          _
        $region28: #{tpu_custom_call.1} parent=11 // pred_fallthru
          _
      $region12: #{tpu_custom_call.1} parent=5 // pred_fallthru
        _
      %p213 = scmp.lt.s32.totalorder %s18, 2
      // Predicated region
      $region29: #{tpu_custom_call.1} parent=5 // pred_check
        %p214 = pneg %p213
      $region30: #{tpu_custom_call.1} parent=5 // pred_check_branch
        %216 = sbr.rel (%p214) target = $region32
      $region31: #{tpu_custom_call.1} parent=5 // pred_region
        // Predicated region
        $region33: #{tpu_custom_call.1} parent=31 // pred_check
          %p217 = pneg %p52
        $region34: #{tpu_custom_call.1} parent=31 // pred_check_branch
          %219 = sbr.rel (%p217) target = $region36
        $region35: #{tpu_custom_call.1} parent=31 // pred_region
          %s220 = sand.u32 %s42, 1
          %s221 = scalar_lea.sflag [#allocation3], %s220
          %s222 = sand.u32 %s42, 1
          %s223 = smul.addr %s222, 128
          %s224 = scalar_lea.vmem [#allocation2], %s223
          %s225 = smul.u32 8, %s26
          %s227 = ssub.s32 2048, 2048
          %228 = vsyncadd %s221, %s227
          %s229 = smul.addr %s225, 2
          %s230 = smul.addr %s25, 16
          %s231 = sadd.s32 %s229, %s230
          %s232 = smul.addr %s231, 128
          %s233 = scalar_lea.hbm %s0, %s232
          %s234 = sshll.u32 %s224, 4
          %s235 = int_to_ptr.vmem [resolvable:$true] %s234
          %240 = dma.hbm_to_vmem [thread:$0]  %s233, 2048, %s235, %s221, 128, 128, 8
        $region36: #{tpu_custom_call.1} parent=31 // pred_fallthru
          _
      $region32: #{tpu_custom_call.1} parent=5 // pred_fallthru
        _
      %p241 = scmp.le.s32.totalorder 1, %s18
      %p242 = scmp.lt.s32.totalorder %s18, 3
      %p243 = pnand %p241, %p242
      %p244 = pneg %p243
      // Predicated region
      $region37: #{tpu_custom_call.1} parent=5 // pred_check
        _
      $region38: #{tpu_custom_call.1} parent=5 // pred_check_branch
        %246 = sbr.rel (%p243) target = $region40
      $region39: #{tpu_custom_call.1} parent=5 // pred_region
        %s247 = ssub.s32 %s18, 1
        %s248 = sand.u32 %s45, 1
        %s249 = scalar_lea.sflag [#allocation3], %s248
        %s250 = sand.u32 %s45, 1
        %s251 = smul.addr %s250, 128
        %s252 = scalar_lea.vmem [#allocation2], %s251
        // Predicated region
        $region41: #{tpu_custom_call.1} parent=39 // pred_check
          %p253 = pneg %p58
        $region42: #{tpu_custom_call.1} parent=39 // pred_check_branch
          %255 = sbr.rel (%p253) target = $region44
        $region43: #{tpu_custom_call.1} parent=39 // pred_region
          %256 = dma.done %s249, 2048
        $region44: #{tpu_custom_call.1} parent=39 // pred_fallthru
          _
        // Predicated region
        $region45: #{tpu_custom_call.1} parent=39 // pred_check
          %p257 = pneg %p79
        $region46: #{tpu_custom_call.1} parent=39 // pred_check_branch
          %259 = sbr.rel (%p257) target = $region48
        $region47: #{tpu_custom_call.1} parent=39 // pred_region
          %260 = dma.done [#allocation6], 128
        $region48: #{tpu_custom_call.1} parent=39 // pred_fallthru
          _
        // Predicated region
        $region49: #{tpu_custom_call.1} parent=39 // pred_check
          %p261 = pneg %p100
        $region50: #{tpu_custom_call.1} parent=39 // pred_check_branch
          %263 = sbr.rel (%p261) target = $region52
        $region51: #{tpu_custom_call.1} parent=39 // pred_region
          %264 = dma.done [#allocation6], 128
        $region52: #{tpu_custom_call.1} parent=39 // pred_fallthru
          _
        %s265 = sand.u32 %s45, 1
        %s266 = scalar_lea.sflag [#allocation3], %s265
        %s267 = sand.u32 %s45, 1
        %s268 = smul.addr %s267, 128
        %s269 = scalar_lea.vmem [#allocation2], %s268
        %p270 = pneg %p58
        %p271 = pneg %p55
        %p272 = pneg %p79
        %p273 = pneg %p76
        %p274 = pneg %p100
        %p275 = pneg %p97
        %p276 = pneg %p121
        %p277 = pneg %p118
        %p278 = pneg %p142
        %p279 = pneg %p139
        %p280 = pneg %p170
        %p281 = pneg %p167
        %s282 = sand.u32 %s157, 1
        %s283 = scalar_lea.sflag [#allocation4], %s282
        %s284 = sand.u32 %s157, 1
        %s285 = smul.addr %s284, 64
        %s286 = scalar_lea.vmem [#allocation8], %s285
        %s287 = smul.u32 8, %s28
        %s288 = smul.u32 8, %s28
        %v289 = vld [vmem:[%s252] sm:$0xff]
        %v290 = vld [vmem:[%s252 + $0x8] sm:$0xff]
        %v291 = vld [vmem:[%s252 + $0x10] sm:$0xff]
        %v292 = vld [vmem:[%s252 + $0x18] sm:$0xff]
        %v293 = vld [vmem:[%s252 + $0x20] sm:$0xff]
        %v294 = vld [vmem:[%s252 + $0x28] sm:$0xff]
        %v295 = vld [vmem:[%s252 + $0x30] sm:$0xff]
        %v296 = vld [vmem:[%s252 + $0x38] sm:$0xff]
        %v297 = vld [vmem:[%s252 + $0x40] sm:$0xff]
        %v298 = vld [vmem:[%s252 + $0x48] sm:$0xff]
        %v299 = vld [vmem:[%s252 + $0x50] sm:$0xff]
        %v300 = vld [vmem:[%s252 + $0x58] sm:$0xff]
        %v301 = vld [vmem:[%s252 + $0x60] sm:$0xff]
        %v302 = vld [vmem:[%s252 + $0x68] sm:$0xff]
        %v303 = vld [vmem:[%s252 + $0x70] sm:$0xff]
        %v304 = vld [vmem:[%s252 + $0x78] sm:$0xff]
        %v305 = vld [vmem:[#allocation5] sm:$0xff]
        %v306 = vld [vmem:[#allocation7] sm:$0xff]
        %vm307 = vcmask 64512
        %v309 = vsel %vm307, %v290, 0
        %v312 = vsel %vm307, %v292, 0
        %v315 = vsel %vm307, %v294, 0
        %v318 = vsel %vm307, %v296, 0
        %v321 = vsel %vm307, %v298, 0
        %v324 = vsel %vm307, %v300, 0
        %v327 = vsel %vm307, %v302, 0
        %v330 = vsel %vm307, %v304, 0
        %332 = vmatprep.subr.mxu0 0.0
        %333 = vmatpush1.msra.mxu0 0.0
        %334 = vmatprep.subr.mxu0 0.0
        %335 = vmatpush1.msra.mxu0 0.0
        %336 = vmatprep.subr.mxu0 0.0
        %337 = vmatpush1.msra.mxu0 0.0
        %338 = vmatprep.subr.mxu0 0.0
        %339 = vmatpush1.msra.mxu0 0.0
        %340 = vmatprep.subr.mxu0 0.0
        %341 = vmatpush1.msra.mxu0 0.0
        %342 = vmatprep.subr.mxu0 0.0
        %343 = vmatpush1.msra.mxu0 0.0
        %344 = vmatprep.subr.mxu0 0.0
        %345 = vmatpush1.msra.mxu0 0.0
        %346 = vmatprep.subr.mxu0 0.0
        %347 = vmatpush1.msra.mxu0 0.0
        %348 = vmatprep.subr.mxu0 0.0
        %349 = vmatpush1.msra.mxu0 0.0
        %350 = vmatprep.subr.mxu0 0.0
        %351 = vmatpush1.msra.mxu0 0.0
        %352 = vmatprep.subr.mxu0 0.0
        %353 = vmatpush1.msra.mxu0 0.0
        %354 = vmatprep.subr.mxu0 0.0
        %355 = vmatpush1.msra.mxu0 0.0
        %356 = vmatprep.subr.mxu0 0.0
        %357 = vmatpush1.msra.mxu0 0.0
        %358 = vmatprep.subr.mxu0 0.0
        %359 = vmatpush1.msra.mxu0 0.0
        %360 = vmatprep.subr.mxu0 0.0
        %361 = vmatpush1.msra.mxu0 0.0
        %362 = vmatprep.subr.mxu0 0.0
        %363 = vmatpush1.msra.mxu0 %v306
        %364 = vmatprep.subr.mxu0 0.0
        %365 = vmatpush2.msra.mxu0 0.0
        %366 = vmatprep.subr.mxu0 0.0
        %367 = vmatpush2.msra.mxu0 0.0
        %368 = vmatprep.subr.mxu0 0.0
        %369 = vmatpush2.msra.mxu0 0.0
        %370 = vmatprep.subr.mxu0 0.0
        %371 = vmatpush2.msra.mxu0 0.0
        %372 = vmatprep.subr.mxu0 0.0
        %373 = vmatpush2.msra.mxu0 0.0
        %374 = vmatprep.subr.mxu0 0.0
        %375 = vmatpush2.msra.mxu0 0.0
        %376 = vmatprep.subr.mxu0 0.0
        %377 = vmatpush2.msra.mxu0 0.0
        %378 = vmatprep.subr.mxu0 0.0
        %379 = vmatpush2.msra.mxu0 0.0
        %380 = vmatprep.subr.mxu0 0.0
        %381 = vmatpush2.msra.mxu0 0.0
        %382 = vmatprep.subr.mxu0 0.0
        %383 = vmatpush2.msra.mxu0 0.0
        %384 = vmatprep.subr.mxu0 0.0
        %385 = vmatpush2.msra.mxu0 0.0
        %386 = vmatprep.subr.mxu0 0.0
        %387 = vmatpush2.msra.mxu0 0.0
        %388 = vmatprep.subr.mxu0 0.0
        %389 = vmatpush2.msra.mxu0 0.0
        %390 = vmatprep.subr.mxu0 0.0
        %391 = vmatpush2.msra.mxu0 0.0
        %392 = vmatprep.subr.mxu0 0.0
        %393 = vmatpush2.msra.mxu0 0.0
        %394 = vmatprep.subr.mxu0 0.0
        %395 = vmatpush2.msra.mxu0 0.0
        %396 = vmatprep.mubr.f32.mxu0 0.0
        %397 = vmatmul.mubr.f32.gmra.mxu0 %v309
        %v398 = vpop.f32.mrf.mxu0
        %v399 = vadd.f32 0.0, %v398
        %v400 = vpop.f32.mrf.mxu0
        %401 = vmatprep.mubr.f32.mxu0 0.0
        %402 = vmatmul.mubr.f32.gmra.mxu0 %v312
        %v403 = vpop.f32.mrf.mxu0
        %v404 = vadd.f32 0.0, %v403
        %v405 = vpop.f32.mrf.mxu0
        %406 = vmatprep.mubr.f32.mxu0 0.0
        %407 = vmatmul.mubr.f32.gmra.mxu0 %v315
        %v408 = vpop.f32.mrf.mxu0
        %v409 = vadd.f32 0.0, %v408
        %v410 = vpop.f32.mrf.mxu0
        %411 = vmatprep.mubr.f32.mxu0 0.0
        %412 = vmatmul.mubr.f32.gmra.mxu0 %v318
        %v413 = vpop.f32.mrf.mxu0
        %v414 = vadd.f32 0.0, %v413
        %v415 = vpop.f32.mrf.mxu0
        %416 = vmatprep.mubr.f32.mxu0 0.0
        %417 = vmatmul.mubr.f32.gmra.mxu0 %v321
        %v418 = vpop.f32.mrf.mxu0
        %v419 = vadd.f32 0.0, %v418
        %v420 = vpop.f32.mrf.mxu0
        %421 = vmatprep.mubr.f32.mxu0 0.0
        %422 = vmatmul.mubr.f32.gmra.mxu0 %v324
        %v423 = vpop.f32.mrf.mxu0
        %v424 = vadd.f32 0.0, %v423
        %v425 = vpop.f32.mrf.mxu0
        %426 = vmatprep.mubr.f32.mxu0 0.0
        %427 = vmatmul.mubr.f32.gmra.mxu0 %v327
        %v428 = vpop.f32.mrf.mxu0
        %v429 = vadd.f32 0.0, %v428
        %v430 = vpop.f32.mrf.mxu0
        %431 = vmatprep.mubr.f32.mxu0 0.0
        %432 = vmatmul.mubr.f32.gmra.mxu0 %v330
        %v433 = vpop.f32.mrf.mxu0
        %v434 = vadd.f32 0.0, %v433
        %v435 = vpop.f32.mrf.mxu0
        %436 = vdwg.mxu0
        %v438 = vsel %vm307, %v289, 0
        %v441 = vsel %vm307, %v291, 0
        %v444 = vsel %vm307, %v293, 0
        %v447 = vsel %vm307, %v295, 0
        %v450 = vsel %vm307, %v297, 0
        %v453 = vsel %vm307, %v299, 0
        %v456 = vsel %vm307, %v301, 0
        %v459 = vsel %vm307, %v303, 0
        %461 = vmatprep.subr.mxu0 0.0
        %462 = vmatpush1.msra.mxu0 0.0
        %463 = vmatprep.subr.mxu0 0.0
        %464 = vmatpush1.msra.mxu0 0.0
        %465 = vmatprep.subr.mxu0 0.0
        %466 = vmatpush1.msra.mxu0 0.0
        %467 = vmatprep.subr.mxu0 0.0
        %468 = vmatpush1.msra.mxu0 0.0
        %469 = vmatprep.subr.mxu0 0.0
        %470 = vmatpush1.msra.mxu0 0.0
        %471 = vmatprep.subr.mxu0 0.0
        %472 = vmatpush1.msra.mxu0 0.0
        %473 = vmatprep.subr.mxu0 0.0
        %474 = vmatpush1.msra.mxu0 0.0
        %475 = vmatprep.subr.mxu0 0.0
        %476 = vmatpush1.msra.mxu0 0.0
        %477 = vmatprep.subr.mxu0 0.0
        %478 = vmatpush1.msra.mxu0 0.0
        %479 = vmatprep.subr.mxu0 0.0
        %480 = vmatpush1.msra.mxu0 0.0
        %481 = vmatprep.subr.mxu0 0.0
        %482 = vmatpush1.msra.mxu0 0.0
        %483 = vmatprep.subr.mxu0 0.0
        %484 = vmatpush1.msra.mxu0 0.0
        %485 = vmatprep.subr.mxu0 0.0
        %486 = vmatpush1.msra.mxu0 0.0
        %487 = vmatprep.subr.mxu0 0.0
        %488 = vmatpush1.msra.mxu0 0.0
        %489 = vmatprep.subr.mxu0 0.0
        %490 = vmatpush1.msra.mxu0 0.0
        %491 = vmatprep.subr.mxu0 0.0
        %492 = vmatpush1.msra.mxu0 %v305
        %493 = vmatprep.subr.mxu0 0.0
        %494 = vmatpush2.msra.mxu0 0.0
        %495 = vmatprep.subr.mxu0 0.0
        %496 = vmatpush2.msra.mxu0 0.0
        %497 = vmatprep.subr.mxu0 0.0
        %498 = vmatpush2.msra.mxu0 0.0
        %499 = vmatprep.subr.mxu0 0.0
        %500 = vmatpush2.msra.mxu0 0.0
        %501 = vmatprep.subr.mxu0 0.0
        %502 = vmatpush2.msra.mxu0 0.0
        %503 = vmatprep.subr.mxu0 0.0
        %504 = vmatpush2.msra.mxu0 0.0
        %505 = vmatprep.subr.mxu0 0.0
        %506 = vmatpush2.msra.mxu0 0.0
        %507 = vmatprep.subr.mxu0 0.0
        %508 = vmatpush2.msra.mxu0 0.0
        %509 = vmatprep.subr.mxu0 0.0
        %510 = vmatpush2.msra.mxu0 0.0
        %511 = vmatprep.subr.mxu0 0.0
        %512 = vmatpush2.msra.mxu0 0.0
        %513 = vmatprep.subr.mxu0 0.0
        %514 = vmatpush2.msra.mxu0 0.0
        %515 = vmatprep.subr.mxu0 0.0
        %516 = vmatpush2.msra.mxu0 0.0
        %517 = vmatprep.subr.mxu0 0.0
        %518 = vmatpush2.msra.mxu0 0.0
        %519 = vmatprep.subr.mxu0 0.0
        %520 = vmatpush2.msra.mxu0 0.0
        %521 = vmatprep.subr.mxu0 0.0
        %522 = vmatpush2.msra.mxu0 0.0
        %523 = vmatprep.subr.mxu0 0.0
        %524 = vmatpush2.msra.mxu0 0.0
        %525 = vmatprep.mubr.f32.mxu0 0.0
        %526 = vmatmul.mubr.f32.gmra.mxu0 %v438
        %v527 = vpop.f32.mrf.mxu0
        %v528 = vadd.f32 %v399, %v527
        %v529 = vpop.f32.mrf.mxu0
        %530 = vmatprep.mubr.f32.mxu0 0.0
        %531 = vmatmul.mubr.f32.gmra.mxu0 %v441
        %v532 = vpop.f32.mrf.mxu0
        %v533 = vadd.f32 %v404, %v532
        %v534 = vpop.f32.mrf.mxu0
        %535 = vmatprep.mubr.f32.mxu0 0.0
        %536 = vmatmul.mubr.f32.gmra.mxu0 %v444
        %v537 = vpop.f32.mrf.mxu0
        %v538 = vadd.f32 %v409, %v537
        %v539 = vpop.f32.mrf.mxu0
        %540 = vmatprep.mubr.f32.mxu0 0.0
        %541 = vmatmul.mubr.f32.gmra.mxu0 %v447
        %v542 = vpop.f32.mrf.mxu0
        %v543 = vadd.f32 %v414, %v542
        %v544 = vpop.f32.mrf.mxu0
        %545 = vmatprep.mubr.f32.mxu0 0.0
        %546 = vmatmul.mubr.f32.gmra.mxu0 %v450
        %v547 = vpop.f32.mrf.mxu0
        %v548 = vadd.f32 %v419, %v547
        %v549 = vpop.f32.mrf.mxu0
        %550 = vmatprep.mubr.f32.mxu0 0.0
        %551 = vmatmul.mubr.f32.gmra.mxu0 %v453
        %v552 = vpop.f32.mrf.mxu0
        %v553 = vadd.f32 %v424, %v552
        %v554 = vpop.f32.mrf.mxu0
        %555 = vmatprep.mubr.f32.mxu0 0.0
        %556 = vmatmul.mubr.f32.gmra.mxu0 %v456
        %v557 = vpop.f32.mrf.mxu0
        %v558 = vadd.f32 %v429, %v557
        %v559 = vpop.f32.mrf.mxu0
        %560 = vmatprep.mubr.f32.mxu0 0.0
        %561 = vmatmul.mubr.f32.gmra.mxu0 %v459
        %v562 = vpop.f32.mrf.mxu0
        %v563 = vadd.f32 %v434, %v562
        %v564 = vpop.f32.mrf.mxu0
        %565 = vdwg.mxu0
        %v566 = vld [vmem:[%s3] sm:$0x1]
        %v568 = vlaneseq
        %v569 = vshrl.u32 %v568, 7
        %v570 = vsub.s32 0, %v569
        %v571 = vrot.slane %v566, %v570
        %v573 = vmul.f32 %v528, %v571
        %v574 = vmul.f32 %v533, %v571
        %v575 = vmul.f32 %v538, %v571
        %v576 = vmul.f32 %v543, %v571
        %v577 = vmul.f32 %v548, %v571
        %v578 = vmul.f32 %v553, %v571
        %v579 = vmul.f32 %v558, %v571
        %v580 = vmul.f32 %v563, %v571
        %v581 = vld [vmem:[%s4] sm:$0x1]
        %v583 = vlaneseq
        %v584 = vshrl.u32 %v583, 7
        %v585 = vsub.s32 0, %v584
        %v586 = vrot.slane %v581, %v585
        %v588 = vadd.f32 %v573, %v586
        %v589 = vadd.f32 %v574, %v586
        %v590 = vadd.f32 %v575, %v586
        %v591 = vadd.f32 %v576, %v586
        %v592 = vadd.f32 %v577, %v586
        %v593 = vadd.f32 %v578, %v586
        %v594 = vadd.f32 %v579, %v586
        %v595 = vadd.f32 %v580, %v586
        %v596 = vsub.f32 0.0, %v588
        %v597 = vsub.f32 0.0, %v589
        %v598 = vsub.f32 0.0, %v590
        %v599 = vsub.f32 0.0, %v591
        %v600 = vsub.f32 0.0, %v592
        %v601 = vsub.f32 0.0, %v593
        %v602 = vsub.f32 0.0, %v594
        %v603 = vsub.f32 0.0, %v595
        %v604 = vmul.f32 %v596, 1.442695
        %v605 = vpow.pop %v604
        %v606 = vmul.f32 %v597, 1.442695
        %v607 = vpow.pop %v606
        %v608 = vmul.f32 %v598, 1.442695
        %v609 = vpow.pop %v608
        %v610 = vmul.f32 %v599, 1.442695
        %v611 = vpow.pop %v610
        %v612 = vmul.f32 %v600, 1.442695
        %v613 = vpow.pop %v612
        %v614 = vmul.f32 %v601, 1.442695
        %v615 = vpow.pop %v614
        %v616 = vmul.f32 %v602, 1.442695
        %v617 = vpow.pop %v616
        %v618 = vmul.f32 %v603, 1.442695
        %v619 = vpow.pop %v618
        %v620 = vadd.f32 %v605, 1.0
        %v621 = vadd.f32 %v607, 1.0
        %v622 = vadd.f32 %v609, 1.0
        %v623 = vadd.f32 %v611, 1.0
        %v624 = vadd.f32 %v613, 1.0
        %v625 = vadd.f32 %v615, 1.0
        %v626 = vadd.f32 %v617, 1.0
        %v627 = vadd.f32 %v619, 1.0
        %v628 = vrcp.pop %v620
        %v629 = vrcp.pop %v621
        %v630 = vrcp.pop %v622
        %v631 = vrcp.pop %v623
        %v632 = vrcp.pop %v624
        %v633 = vrcp.pop %v625
        %v634 = vrcp.pop %v626
        %v635 = vrcp.pop %v627
        %v636 = vmul.f32 %v588, %v628
        %v637 = vmul.f32 %v589, %v629
        %v638 = vmul.f32 %v590, %v630
        %v639 = vmul.f32 %v591, %v631
        %v640 = vmul.f32 %v592, %v632
        %v641 = vmul.f32 %v593, %v633
        %v642 = vmul.f32 %v594, %v634
        %v643 = vmul.f32 %v595, %v635
        %644 = vst.msk [vmem:[%s286] sm:$0xff] %vm307, %v636
        %645 = vst.msk [vmem:[%s286 + $0x8] sm:$0xff] %vm307, %v637
        %646 = vst.msk [vmem:[%s286 + $0x10] sm:$0xff] %vm307, %v638
        %647 = vst.msk [vmem:[%s286 + $0x18] sm:$0xff] %vm307, %v639
        %648 = vst.msk [vmem:[%s286 + $0x20] sm:$0xff] %vm307, %v640
        %649 = vst.msk [vmem:[%s286 + $0x28] sm:$0xff] %vm307, %v641
        %650 = vst.msk [vmem:[%s286 + $0x30] sm:$0xff] %vm307, %v642
        %651 = vst.msk [vmem:[%s286 + $0x38] sm:$0xff] %vm307, %v643
        %s652 = sand.u32 %s157, 1
        %s653 = scalar_lea.sflag [#allocation4], %s652
        %s654 = sand.u32 %s157, 1
        %s655 = smul.addr %s654, 64
        %s656 = scalar_lea.vmem [#allocation8], %s655
        // Predicated region
        $region53: #{tpu_custom_call.1} parent=39 // pred_check
          %p657 = pneg %p167
        $region54: #{tpu_custom_call.1} parent=39 // pred_check_branch
          %659 = sbr.rel (%p657) target = $region56
        $region55: #{tpu_custom_call.1} parent=39 // pred_region
          %s660 = smul.u32 8, %s28
          %s662 = ssub.s32 1024, 1024
          %663 = vsyncadd %s653, %s662
          %s664 = smul.addr %s27, 8
          %s665 = sadd.s32 %s660, %s664
          %s666 = smul.addr %s665, 128
          %s667 = scalar_lea.hbm %s5, %s666
          %s668 = sshll.u32 %s656, 4
          %s669 = int_to_ptr.vmem [resolvable:$true] %s668
          %674 = dma.vmem_to_hbm [thread:$0]  %s669, 1024, %s667, %s653, 128, 128, 8
        $region56: #{tpu_custom_call.1} parent=39 // pred_fallthru
          _
      $region40: #{tpu_custom_call.1} parent=5 // pred_fallthru
        _
      %p675 = scmp.le.s32.totalorder 2, %s18
      // Predicated region
      $region57: #{tpu_custom_call.1} parent=5 // pred_check
        %p676 = pneg %p675
      $region58: #{tpu_custom_call.1} parent=5 // pred_check_branch
        %678 = sbr.rel (%p676) target = $region60
      $region59: #{tpu_custom_call.1} parent=5 // pred_region
        %s679 = ssub.s32 %s18, 2
        // Predicated region
        $region61: #{tpu_custom_call.1} parent=59 // pred_check
          %p680 = pneg %p173
        $region62: #{tpu_custom_call.1} parent=59 // pred_check_branch
          %682 = sbr.rel (%p680) target = $region64
        $region63: #{tpu_custom_call.1} parent=59 // pred_region
          %s683 = sand.u32 %s158, 1
          %s684 = scalar_lea.sflag [#allocation4], %s683
          %s685 = sand.u32 %s158, 1
          %s686 = smul.addr %s685, 64
          %s687 = scalar_lea.vmem [#allocation8], %s686
          %688 = dma.done %s684, 1024
        $region64: #{tpu_custom_call.1} parent=59 // pred_fallthru
          _
      $region60: #{tpu_custom_call.1} parent=5 // pred_fallthru
        _
    $region6: #{tpu_custom_call.1} parent=1 // loop_footer
      %s22 = sadd.s32 1, %s18
    $region7: #{tpu_custom_call.1} parent=1 // loop_footer_branch
      %17 = sbr.rel target = $region3
    $region8: #{tpu_custom_call.1} parent=1 // loop_exit
      _
    %689 = vsyncpa [#allocation3], 1
    %s690 = scalar_lea.sflag [#allocation3], 1
    %691 = vsyncpa %s690, 1
    %692 = vsyncpa [#allocation6], 1
    %693 = vsyncpa [#allocation4], 1
    %s694 = scalar_lea.sflag [#allocation4], 1
    %695 = vsyncpa %s694, 1

</llo_original>
